<compile_context>
chip_gen: v6e
topology: v6e:2x2x1
jax: 0.10.0
libtpu: 0.0.40
codegen_flags: <defaults>
</compile_context>

<pallas_src>
import functools

import jax
import jax.numpy as jnp
from jax.experimental import pallas as pl
from jax.experimental.pallas import tpu as pltpu

_F32 = jnp.float32


# ---------------------------------------------------------------------------
# Shared tiny-FC cSE gate (VPU/XLU — no degenerate MXU matmuls).
# ---------------------------------------------------------------------------
def _cse_gate(m, w1t, b1, w2, b2):
    """m: (C,1) channel mean -> gate (C,1). fc1/fc2 in broadcast-mul + small reductions."""
    z = jnp.sum(w1t * m, axis=0, keepdims=True) + b1        # (1, Cr) == (W1 @ m)^T + b1
    z = jnp.maximum(z, 0.0)                                  # ReLU
    return jax.nn.sigmoid(jnp.sum(w2 * z, axis=1, keepdims=True) + b2)   # (C, 1)


# ---------------------------------------------------------------------------
# FUSED kernel: mean + cSE gate + sSE gate + apply, one HBM read of x per batch.
# ---------------------------------------------------------------------------
def _fused_kernel(bsp_ref,                   # SMEM (1,) spatial 1x1-conv bias
                  x_ref,                     # (1, C, N)
                  w1t_ref, b1_ref,           # (C, Cr), (1, Cr)
                  w2_ref, b2_ref,            # (C, Cr), (C, 1)
                  wsp_ref,                   # (C, 1)
                  out_ref,                   # (1, C, N)
                  *, inv_n):
    x = x_ref[0].astype(_F32)                                          # (C, N)
    m = jnp.sum(x, axis=-1, keepdims=True) * inv_n                     # (C, 1)
    g = _cse_gate(m, w1t_ref[...], b1_ref[...], w2_ref[...], b2_ref[...])   # (C, 1)
    s = jax.nn.sigmoid(jnp.sum(x * wsp_ref[...], axis=0, keepdims=True)
                       + bsp_ref[0])                                    # (1, N)
    out_ref[0] = jnp.maximum(x * g, x * s).astype(out_ref.dtype)


# ---------------------------------------------------------------------------
# Two-pass fallback, pass 1: tiled channel sum + cSE gate in the last-tile epilogue.
# ---------------------------------------------------------------------------
def _gate_kernel(x_ref,                      # (1, C, TNm)
                 w1t_ref, b1_ref, w2_ref, b2_ref,
                 g_ref,                      # (1, C, 1) -- resident across tile axis
                 acc_ref,                    # VMEM scratch (C, 1) f32, raw sum
                 *, inv_n):
    t = pl.program_id(1)

    @pl.when(t == 0)
    def _():
        acc_ref[...] = jnp.zeros_like(acc_ref)

    acc_ref[...] += jnp.sum(x_ref[0].astype(_F32), axis=-1, keepdims=True)

    @pl.when(t == pl.num_programs(1) - 1)
    def _():
        m = acc_ref[...] * inv_n                                       # divide once
        g_ref[0] = _cse_gate(m, w1t_ref[...], b1_ref[...], w2_ref[...], b2_ref[...])


# ---------------------------------------------------------------------------
# Two-pass fallback, pass 2: sSE gate + apply (cSE gate precomputed, fed as input).
# ---------------------------------------------------------------------------
def _apply_kernel(bsp_ref,                   # SMEM (1,)
                  g_ref,                     # (1, C, 1) cSE gate
                  x_ref,                     # (1, C, TN)
                  wsp_ref,                   # (C, 1)
                  out_ref):                  # (1, C, TN)
    x = x_ref[0].astype(_F32)
    s = jax.nn.sigmoid(jnp.sum(x * wsp_ref[...], axis=0, keepdims=True) + bsp_ref[0])
    out_ref[0] = jnp.maximum(x * g_ref[0], x * s).astype(out_ref.dtype)


# ---------------------------------------------------------------------------
# Byte-budget tile / VMEM-limit helpers.
# ---------------------------------------------------------------------------
def _pick_tile(n, c, elem_bytes, target_bytes):
    """Largest multiple-of-128 divisor tn of n with c*tn*elem_bytes <= target_bytes.
    Falls back to the smallest 128-multiple divisor, or n itself (tiny spatial)."""
    best = None
    smallest = None
    for t in range(128, n + 1, 128):
        if n % t:
            continue
        if smallest is None:
            smallest = t
        if c * t * elem_bytes <= target_bytes:
            best = t
    if best is not None:
        return best
    return smallest if smallest is not None else n


def _vmem_limit(step_bytes):
    """Scoped-VMEM request sized to the per-step footprint (+headroom), capped at
    48 MiB so a config validated on v5e/v6e (128 MiB) stays legal on v7x (64 MiB)."""
    return int(min(max(step_bytes + (4 << 20), 16 << 20), 48 << 20))


# ---------------------------------------------------------------------------
# Forward wrapper.
# ---------------------------------------------------------------------------
def channel_spatial_se_forward(x_nchw, w_fc1, b_fc1, w_fc2, b_fc2, w_sp, b_sp, *,
                               fuse_budget_bytes=20 << 20,
                               apply_block_bytes=2 << 20,
                               mean_block_bytes=4 << 20,
                               force_two_pass=False,
                               tile_apply=None, tile_mean=None):
    """x_nchw: (B, C, H, W).  Weights in PyTorch layout:
       fc1.weight (Cr, C), fc1.bias (Cr,), fc2.weight (C, Cr), fc2.bias (C,),
       sSE conv weight (C,) [from (1, C, 1, 1)], conv bias scalar."""
    B, C, H, W = x_nchw.shape
    N = H * W
    Cr = w_fc1.shape[0]

    x3 = jnp.asarray(x_nchw).reshape(B, C, N)            # free view, no transpose
    out_dtype = x3.dtype
    elem = jnp.dtype(out_dtype).itemsize

    # ---- tiny weight plumbing (host side) ----
    w1t = jnp.asarray(w_fc1, _F32).T                      # (C, Cr)
    b1 = jnp.asarray(b_fc1, _F32).reshape(1, Cr)
    w2 = jnp.asarray(w_fc2, _F32)                         # (C, Cr)
    b2 = jnp.asarray(b_fc2, _F32).reshape(C, 1)
    wsp = jnp.asarray(w_sp, _F32).reshape(C, 1)
    bsp = jnp.asarray(b_sp, _F32).reshape(1)

    weight_bytes = 4 * (2 * C * Cr + Cr + 2 * C + 1)

    # Per-step footprint if fused: x slab + out slab, each double-buffered, + weights.
    fused_step_bytes = 4 * C * N * elem + 2 * weight_bytes
    use_fused = (not force_two_pass) and fused_step_bytes <= fuse_budget_bytes

    cost = pl.CostEstimate(
        flops=int(7 * B * C * N),                      # mean + sSE conv + 2 scales + max
        transcendentals=int(B * (N + C + Cr)),         # sigmoids (gate computed once/batch)
        bytes_accessed=int((2 if use_fused else 3) * B * C * N * elem))

    if use_fused:
        # ---- single fused pass: x read from HBM exactly once per batch ----
        out3 = pl.pallas_call(
            functools.partial(_fused_kernel, inv_n=1.0 / N),
            out_shape=jax.ShapeDtypeStruct((B, C, N), out_dtype),
            grid=(B,),
            in_specs=[
                pl.BlockSpec(memory_space=pltpu.SMEM),             # bsp (scalar)
                pl.BlockSpec((1, C, N), lambda b: (b, 0, 0)),      # x slab
                pl.BlockSpec((C, Cr), lambda b: (0, 0)),           # W1^T
                pl.BlockSpec((1, Cr), lambda b: (0, 0)),           # b1
                pl.BlockSpec((C, Cr), lambda b: (0, 0)),           # W2
                pl.BlockSpec((C, 1), lambda b: (0, 0)),            # b2
                pl.BlockSpec((C, 1), lambda b: (0, 0)),            # wsp
            ],
            out_specs=pl.BlockSpec((1, C, N), lambda b: (b, 0, 0)),
            compiler_params=pltpu.CompilerParams(
                dimension_semantics=("parallel",),
                vmem_limit_bytes=_vmem_limit(fused_step_bytes)),
            cost_estimate=cost,
        )(bsp, x3, w1t, b1, w2, b2, wsp)
        return out3.reshape(B, C, H, W)

    # ---- two-pass tiled fallback (large H*W) ----
    tn_mean = tile_mean if tile_mean is not None else _pick_tile(N, C, elem, mean_block_bytes)
    tn = tile_apply if tile_apply is not None else _pick_tile(N, C, elem, apply_block_bytes)
    assert N % tn_mean == 0 and N % tn == 0, "spatial tiles must divide H*W"

    # pass 1: tiled channel-sum reduction + per-batch cSE gate in last-tile epilogue
    gate_step_bytes = 2 * C * tn_mean * elem + 2 * weight_bytes + 4 * C
    g = pl.pallas_call(
        functools.partial(_gate_kernel, inv_n=1.0 / N),
        out_shape=jax.ShapeDtypeStruct((B, C, 1), _F32),
        grid=(B, N // tn_mean),
        in_specs=[
            pl.BlockSpec((1, C, tn_mean), lambda b, t: (b, 0, t)),  # x tile
            pl.BlockSpec((C, Cr), lambda b, t: (0, 0)),             # W1^T
            pl.BlockSpec((1, Cr), lambda b, t: (0, 0)),             # b1
            pl.BlockSpec((C, Cr), lambda b, t: (0, 0)),             # W2
            pl.BlockSpec((C, 1), lambda b, t: (0, 0)),              # b2
        ],
        out_specs=pl.BlockSpec((1, C, 1), lambda b, t: (b, 0, 0)),
        scratch_shapes=[pltpu.VMEM((C, 1), _F32)],
        compiler_params=pltpu.CompilerParams(
            dimension_semantics=("parallel", "arbitrary"),
            vmem_limit_bytes=_vmem_limit(gate_step_bytes)),
    )(x3, w1t, b1, w2, b2)

    # pass 2: sSE gate + apply (cSE gate is a tiny (1,C,1) input — no per-tile recompute)
    apply_step_bytes = 4 * C * tn * elem + 4 * (2 * C + 1) + 4 * C
    out3 = pl.pallas_call(
        _apply_kernel,
        out_shape=jax.ShapeDtypeStruct((B, C, N), out_dtype),
        grid=(B, N // tn),
        in_specs=[
            pl.BlockSpec(memory_space=pltpu.SMEM),                  # bsp (scalar)
            pl.BlockSpec((1, C, 1), lambda b, t: (b, 0, 0)),        # cSE gate
            pl.BlockSpec((1, C, tn), lambda b, t: (b, 0, t)),       # x tile
            pl.BlockSpec((C, 1), lambda b, t: (0, 0)),              # wsp
        ],
        out_specs=pl.BlockSpec((1, C, tn), lambda b, t: (b, 0, t)),
        compiler_params=pltpu.CompilerParams(
            dimension_semantics=("parallel", "parallel"),
            vmem_limit_bytes=_vmem_limit(apply_step_bytes)),
        cost_estimate=cost,
    )(bsp, g, x3, wsp)
    return out3.reshape(B, C, H, W)


def channel_spatial_se_reference(x, w_fc1, b_fc1, w_fc2, b_fc2, w_sp, b_sp):
    """Pure-JAX reference matching the PyTorch ChannelSpatialSELayer forward."""
    B, C, H, W = x.shape
    sq = x.reshape(B, C, -1).mean(axis=2)                            # (B, C)
    z = jax.nn.relu(sq @ w_fc1.T + b_fc1)                            # (B, Cr)
    g = jax.nn.sigmoid(z @ w_fc2.T + b_fc2)                          # (B, C)
    cse = x * g[:, :, None, None]
    s = jax.nn.sigmoid(jnp.einsum('c,bchw->bhw', w_sp.reshape(-1), x) + b_sp)
    sse = x * s[:, None, :, :]
    return jnp.maximum(cse, sse)


if __name__ == "__main__":
    B, C, H, W = 2, 4, 16, 16
    reduction_ratio = 2                     # ChannelSpatialSELayer default
    Cr = C // reduction_ratio

    key = jax.random.PRNGKey(0)
    ks = jax.random.split(key, 7)
    x = jax.random.normal(ks[0], (B, C, H, W), jnp.float32)
    w_fc1 = jax.random.normal(ks[1], (Cr, C), jnp.float32) * 0.3
    b_fc1 = jax.random.normal(ks[2], (Cr,), jnp.float32) * 0.1
    w_fc2 = jax.random.normal(ks[3], (C, Cr), jnp.float32) * 0.3
    b_fc2 = jax.random.normal(ks[4], (C,), jnp.float32) * 0.1
    w_sp = jax.random.normal(ks[5], (C,), jnp.float32) * 0.3     # Conv2d(C,1,1).weight
    b_sp = jax.random.normal(ks[6], (), jnp.float32) * 0.1       # Conv2d(C,1,1).bias

    ref = channel_spatial_se_reference(x, w_fc1, b_fc1, w_fc2, b_fc2, w_sp, b_sp)

    # Fused single-pass path (default: per-batch (C, HW) slab fits the VMEM budget).
    out_fused = jax.block_until_ready(
        channel_spatial_se_forward(x, w_fc1, b_fc1, w_fc2, b_fc2, w_sp, b_sp))
    assert out_fused.shape == (B, C, H, W)
    err_f = jnp.max(jnp.abs(out_fused - ref))
    assert jnp.allclose(out_fused, ref, atol=1e-4, rtol=1e-4), f"fused max abs err {err_f}"

    # Two-pass tiled fallback (tile=128 forces a 2-tile grid so the resident-accumulator
    # reduction and the hoisted-gate epilogue are exercised).
    out_tiled = jax.block_until_ready(
        channel_spatial_se_forward(x, w_fc1, b_fc1, w_fc2, b_fc2, w_sp, b_sp,
                                   force_two_pass=True, tile_apply=128, tile_mean=128))
    err_t = jnp.max(jnp.abs(out_tiled - ref))
    assert jnp.allclose(out_tiled, ref, atol=1e-4, rtol=1e-4), f"two-pass max abs err {err_t}"

    print("KERNEL_OK")
</pallas_src>

<mosaic_0001>
module attributes {stable_mosaic.version = 11 : i64} {
  func.func @_fused_kernel(%arg0: i32, %arg1: memref<1xf32, #tpu.memory_space<smem>>, %arg2: memref<1x4x256xf32, #tpu.memory_space<vmem>>, %arg3: memref<4x2xf32, #tpu.memory_space<vmem>>, %arg4: memref<1x2xf32, #tpu.memory_space<vmem>>, %arg5: memref<4x2xf32, #tpu.memory_space<vmem>>, %arg6: memref<4x1xf32, #tpu.memory_space<vmem>>, %arg7: memref<4x1xf32, #tpu.memory_space<vmem>>, %arg8: memref<1x4x256xf32, #tpu.memory_space<vmem>>) attributes {dimension_semantics = [#tpu.dimension_semantics<parallel>], iteration_bounds = array<i64: 2>, scalar_prefetch = 0 : i64, scratch_operands = 0 : i64, tpu.core_type = #tpu.core_type<tc>, window_params = [{transform_indices = @transform_0, window_bounds = array<i64: 1>}, {transform_indices = @transform_1, window_bounds = array<i64: 1, 4, 256>}, {pipeline_mode = #tpu.pipeline_mode<synchronous>, transform_indices = @transform_2, window_bounds = array<i64: 4, 2>}, {pipeline_mode = #tpu.pipeline_mode<synchronous>, transform_indices = @transform_3, window_bounds = array<i64: 1, 2>}, {pipeline_mode = #tpu.pipeline_mode<synchronous>, transform_indices = @transform_4, window_bounds = array<i64: 4, 2>}, {pipeline_mode = #tpu.pipeline_mode<synchronous>, transform_indices = @transform_5, window_bounds = array<i64: 4, 1>}, {pipeline_mode = #tpu.pipeline_mode<synchronous>, transform_indices = @transform_6, window_bounds = array<i64: 4, 1>}, {transform_indices = @transform_7, window_bounds = array<i64: 1, 4, 256>}]} {
    %c0 = arith.constant 0 : index
    %c0_0 = arith.constant 0 : index
    %c0_1 = arith.constant 0 : index
    %0 = vector.load %arg2[%c0, %c0_0, %c0_1] : memref<1x4x256xf32, #tpu.memory_space<vmem>>, vector<1x4x256xf32>
    %1 = vector.shape_cast %0 : vector<1x4x256xf32> to vector<4x256xf32>
    %cst = arith.constant dense<0.000000e+00> : vector<4xf32>
    %2 = vector.multi_reduction <add>, %1, %cst [1] : vector<4x256xf32> to vector<4xf32>
    %3 = vector.shape_cast %2 : vector<4xf32> to vector<4x1xf32>
    %cst_2 = arith.constant 3.906250e-03 : f32
    %4 = vector.broadcast %cst_2 : f32 to vector<4x1xf32>
    %5 = arith.mulf %3, %4 : vector<4x1xf32>
    %c0_3 = arith.constant 0 : index
    %c0_4 = arith.constant 0 : index
    %6 = vector.load %arg3[%c0_3, %c0_4] : memref<4x2xf32, #tpu.memory_space<vmem>>, vector<4x2xf32>
    %c0_5 = arith.constant 0 : index
    %c0_6 = arith.constant 0 : index
    %7 = vector.load %arg4[%c0_5, %c0_6] : memref<1x2xf32, #tpu.memory_space<vmem>>, vector<1x2xf32>
    %c0_7 = arith.constant 0 : index
    %c0_8 = arith.constant 0 : index
    %8 = vector.load %arg5[%c0_7, %c0_8] : memref<4x2xf32, #tpu.memory_space<vmem>>, vector<4x2xf32>
    %c0_9 = arith.constant 0 : index
    %c0_10 = arith.constant 0 : index
    %9 = vector.load %arg6[%c0_9, %c0_10] : memref<4x1xf32, #tpu.memory_space<vmem>>, vector<4x1xf32>
    %10 = vector.broadcast %5 : vector<4x1xf32> to vector<4x2xf32>
    %11 = arith.mulf %6, %10 : vector<4x2xf32>
    %cst_11 = arith.constant dense<0.000000e+00> : vector<2xf32>
    %12 = vector.multi_reduction <add>, %11, %cst_11 [0] : vector<4x2xf32> to vector<2xf32>
    %13 = vector.shape_cast %12 : vector<2xf32> to vector<1x2xf32>
    %14 = arith.addf %13, %7 : vector<1x2xf32>
    %cst_12 = arith.constant 0.000000e+00 : f32
    %15 = vector.broadcast %cst_12 : f32 to vector<1x2xf32>
    %16 = arith.maximumf %14, %15 : vector<1x2xf32>
    %17 = vector.broadcast %16 : vector<1x2xf32> to vector<4x2xf32>
    %18 = arith.mulf %8, %17 : vector<4x2xf32>
    %cst_13 = arith.constant dense<0.000000e+00> : vector<4xf32>
    %19 = vector.multi_reduction <add>, %18, %cst_13 [1] : vector<4x2xf32> to vector<4xf32>
    %20 = vector.shape_cast %19 : vector<4xf32> to vector<4x1xf32>
    %21 = arith.addf %20, %9 : vector<4x1xf32>
    %22 = arith.negf %21 : vector<4x1xf32>
    %23 = math.exp %22 : vector<4x1xf32>
    %cst_14 = arith.constant 1.000000e+00 : f32
    %24 = vector.broadcast %cst_14 : f32 to vector<4x1xf32>
    %25 = arith.addf %24, %23 : vector<4x1xf32>
    %26 = arith.divf %24, %25 : vector<4x1xf32>
    %c0_15 = arith.constant 0 : index
    %c0_16 = arith.constant 0 : index
    %27 = vector.load %arg7[%c0_15, %c0_16] : memref<4x1xf32, #tpu.memory_space<vmem>>, vector<4x1xf32>
    %28 = vector.broadcast %27 : vector<4x1xf32> to vector<4x256xf32>
    %29 = arith.mulf %1, %28 : vector<4x256xf32>
    %cst_17 = arith.constant dense<0.000000e+00> : vector<256xf32>
    %30 = vector.multi_reduction <add>, %29, %cst_17 [0] : vector<4x256xf32> to vector<256xf32>
    %31 = vector.shape_cast %30 : vector<256xf32> to vector<1x256xf32>
    %c0_18 = arith.constant 0 : index
    %32 = memref.load %arg1[%c0_18] : memref<1xf32, #tpu.memory_space<smem>>
    %33 = vector.broadcast %32 : f32 to vector<1x256xf32>
    %34 = arith.addf %31, %33 : vector<1x256xf32>
    %35 = arith.negf %34 : vector<1x256xf32>
    %36 = math.exp %35 : vector<1x256xf32>
    %cst_19 = arith.constant 1.000000e+00 : f32
    %37 = vector.broadcast %cst_19 : f32 to vector<1x256xf32>
    %38 = arith.addf %37, %36 : vector<1x256xf32>
    %39 = arith.divf %37, %38 : vector<1x256xf32>
    %40 = vector.broadcast %26 : vector<4x1xf32> to vector<4x256xf32>
    %41 = arith.mulf %1, %40 : vector<4x256xf32>
    %42 = vector.broadcast %39 : vector<1x256xf32> to vector<4x256xf32>
    %43 = arith.mulf %1, %42 : vector<4x256xf32>
    %44 = arith.maximumf %41, %43 : vector<4x256xf32>
    %c0_20 = arith.constant 0 : index
    %c0_21 = arith.constant 0 : index
    %c0_22 = arith.constant 0 : index
    %45 = vector.load %arg8[%c0_20, %c0_21, %c0_22] : memref<1x4x256xf32, #tpu.memory_space<vmem>>, vector<1x4x256xf32>
    %46 = vector.shape_cast %45 : vector<1x4x256xf32> to vector<4x256xf32>
    %47 = vector.shape_cast %44 : vector<4x256xf32> to vector<1x4x256xf32>
    tpu.vector_store %arg8[%c0_20, %c0_21, %c0_22], %47 {strides = array<i32>} : memref<1x4x256xf32, #tpu.memory_space<vmem>>, vector<1x4x256xf32>,
    return
  }
  func.func @transform_0(%arg0: i32) -> i32 {
    %c0_i32 = arith.constant 0 : i32
    %c0_i32_0 = arith.constant 0 : i32
    return %c0_i32 : i32
  }
  func.func @transform_1(%arg0: i32) -> (i32, i32, i32) {
    %c0_i32 = arith.constant 0 : i32
    %c0_i32_0 = arith.constant 0 : i32
    %c0_i32_1 = arith.constant 0 : i32
    return %arg0, %c0_i32, %c0_i32_0 : i32, i32, i32
  }
  func.func @transform_2(%arg0: i32) -> (i32, i32) {
    %c0_i32 = arith.constant 0 : i32
    %c0_i32_0 = arith.constant 0 : i32
    %c0_i32_1 = arith.constant 0 : i32
    return %c0_i32, %c0_i32_0 : i32, i32
  }
  func.func @transform_3(%arg0: i32) -> (i32, i32) {
    %c0_i32 = arith.constant 0 : i32
    %c0_i32_0 = arith.constant 0 : i32
    %c0_i32_1 = arith.constant 0 : i32
    return %c0_i32, %c0_i32_0 : i32, i32
  }
  func.func @transform_4(%arg0: i32) -> (i32, i32) {
    %c0_i32 = arith.constant 0 : i32
    %c0_i32_0 = arith.constant 0 : i32
    %c0_i32_1 = arith.constant 0 : i32
    return %c0_i32, %c0_i32_0 : i32, i32
  }
  func.func @transform_5(%arg0: i32) -> (i32, i32) {
    %c0_i32 = arith.constant 0 : i32
    %c0_i32_0 = arith.constant 0 : i32
    %c0_i32_1 = arith.constant 0 : i32
    return %c0_i32, %c0_i32_0 : i32, i32
  }
  func.func @transform_6(%arg0: i32) -> (i32, i32) {
    %c0_i32 = arith.constant 0 : i32
    %c0_i32_0 = arith.constant 0 : i32
    %c0_i32_1 = arith.constant 0 : i32
    return %c0_i32, %c0_i32_0 : i32, i32
  }
  func.func @transform_7(%arg0: i32) -> (i32, i32, i32) {
    %c0_i32 = arith.constant 0 : i32
    %c0_i32_0 = arith.constant 0 : i32
    %c0_i32_1 = arith.constant 0 : i32
    return %arg0, %c0_i32, %c0_i32_0 : i32, i32, i32
  }
}

</mosaic_0001>

<llo_original>
// kernel: tpu_custom_call.1
$region0: #{tpu_custom_call.1}
  #allocation0 [shape = 'u32[]', space=smem, size = 0x4, offset = 0x4, fixed_abs, tag = 'smem constant byte address 0x4 - core index']
  #allocation1 [shape = 'u32[144,128]{1,0:T(1,128)}', space=vmem, size = 0x12000, scoped, tag = 'internal scratch']
  #allocation2 [shape = 'f32[1]{0:T(128)S(6)}', space=smem, size = 0x200, scoped, tag = 'scoped memory for tpu_custom_call.1']
  %s0 = inlined_call_operand.<no memory space> [shape: f32[1], index: 0, kind: input, shape index: {}]
  %s1 = inlined_call_operand.vmem [shape: f32[2,4,256], index: 1, kind: input, shape index: {}]
  %s2 = inlined_call_operand.vmem [shape: f32[4,2], index: 2, kind: input, shape index: {}]
  %s3 = inlined_call_operand.vmem [shape: f32[1,2], index: 3, kind: input, shape index: {}]
  %s4 = inlined_call_operand.vmem [shape: f32[4,2], index: 4, kind: input, shape index: {}]
  %s5 = inlined_call_operand.vmem [shape: f32[4,1], index: 5, kind: input, shape index: {}]
  %s6 = inlined_call_operand.vmem [shape: f32[4,1], index: 6, kind: input, shape index: {}]
  %s7 = inlined_call_operand.hbm [shape: f32[2,4,256], index: 7, kind: output, shape index: {}]
  %s8 = sld [smem:[#allocation0]]
  $region61: #{tpu_custom_call.1} parent=0
    _
  %s10 = ssub.s32 1, %s8
  %s11 = scalar_select 0, %s10, %s8
  %12 = sst [smem:[#allocation2]] %s0
  $region1: #{tpu_custom_call.1} parent=0
    #allocation3 [shape = 'u8[8192]{0}', space=vmem, size = 0x2000, scoped, tag = 'output window, operand 0']
    #allocation4 [shape = 's32[2]{0}', space=sflag, size = 0x8, scoped, tag = 'scoped memory for tpu_custom_call.1']
    %13 = vsyncpa [#allocation4], 0
    %s14 = scalar_lea.sflag [#allocation4], 1
    %15 = vsyncpa %s14, 0
    loop: start=0, step=1, limit=4
    $region2: #{tpu_custom_call.1} parent=1 // loop_pre_header
      _
    $region3: #{tpu_custom_call.1} parent=1 // loop_header
      %s17 = sphi 0, %s21
      %p18 = scmp.ge.s32.totalorder %s17, 4
      %s25 = sphi 0, %s25
      %s27 = sphi 0, %s25
      %s28 = sphi 0, %s27
      %s42 = sphi 0, %s28
      %s48 = sphi 0, %s50
      %s51 = sphi 0, %s48
      %s52 = sphi 0, %s51
      %s68 = sphi 0, %s52
      %s72 = sphi 0, %s72
      %s74 = sphi 0, %s72
      %s75 = sphi 0, %s74
      %s89 = sphi 0, %s75
      %s93 = sphi 0, %s93
      %s95 = sphi 0, %s93
      %s96 = sphi 0, %s95
      %s110 = sphi 0, %s96
      %s114 = sphi 0, %s114
      %s116 = sphi 0, %s114
      %s117 = sphi 0, %s116
      %s131 = sphi 0, %s117
      %s135 = sphi 0, %s135
      %s137 = sphi 0, %s135
      %s138 = sphi 0, %s137
      %s152 = sphi 0, %s138
      %s156 = sphi 0, %s156
      %s158 = sphi 0, %s156
      %s159 = sphi 0, %s158
      %s173 = sphi 0, %s159
      %s179 = sphi 0, %s181
      %s182 = sphi 0, %s179
      %s183 = sphi 0, %s182
      %s199 = sphi 0, %s183
    $region4: #{tpu_custom_call.1} parent=1 // loop_header_branch
      %20 = sbr.rel (%p18) target = $region8
    $region5: #{tpu_custom_call.1} parent=1 // loop_body
      %s22 = ssub.s32 %s17, 1
      %s23 = ssub.s32 %s17, 2
      %s24 = sadd.s32 %s17, 1
      %s26 = sadd.s32 %s25, 1
      %p29 = scmp.eq.s32.totalorder %s17, 1
      %p30 = scmp.ne.s32.totalorder %s25, %s27
      %p31 = scmp.eq.s32.totalorder %s17, 0
      %p32 = por %p30, %p31
      %p33 = scmp.ne.s32.totalorder %s25, %s27
      %p34 = scmp.eq.s32.totalorder %s22, 1
      %p35 = por %p33, %p34
      %p36 = scmp.ne.s32.totalorder %s27, %s28
      %p37 = scmp.eq.s32.totalorder %s22, 0
      %p38 = por %p36, %p37
      %p39 = scmp.ne.s32.totalorder %s27, %s28
      %p40 = scmp.eq.s32.totalorder %s23, 1
      %p41 = por %p39, %p40
      %p43 = scmp.ne.s32.totalorder %s28, %s42
      %p44 = scmp.eq.s32.totalorder %s23, 0
      %p45 = por %p43, %p44
      %s46 = ssub.s32 %s17, %s24
      %p47 = scmp.eq.s32.totalorder %s46, 0
      %s49 = sadd.s32 %s48, 1
      %s50 = scalar_select %p47, %s48, %s49
      %p53 = pneg %p47
      %p54 = scmp.eq.s32.totalorder %s17, 1
      %p55 = por %p53, %p54
      %p56 = scmp.ne.s32.totalorder %s48, %s51
      %p57 = scmp.eq.s32.totalorder %s17, 0
      %p58 = por %p56, %p57
      %p59 = scmp.ne.s32.totalorder %s48, %s51
      %p60 = scmp.eq.s32.totalorder %s22, 1
      %p61 = por %p59, %p60
      %p62 = scmp.ne.s32.totalorder %s51, %s52
      %p63 = scmp.eq.s32.totalorder %s22, 0
      %p64 = por %p62, %p63
      %p65 = scmp.ne.s32.totalorder %s51, %s52
      %p66 = scmp.eq.s32.totalorder %s23, 1
      %p67 = por %p65, %p66
      %p69 = scmp.ne.s32.totalorder %s52, %s68
      %p70 = scmp.eq.s32.totalorder %s23, 0
      %p71 = por %p69, %p70
      %s73 = sadd.s32 %s72, 1
      %p76 = scmp.eq.s32.totalorder %s17, 1
      %p77 = scmp.ne.s32.totalorder %s72, %s74
      %p78 = scmp.eq.s32.totalorder %s17, 0
      %p79 = por %p77, %p78
      %p80 = scmp.ne.s32.totalorder %s72, %s74
      %p81 = scmp.eq.s32.totalorder %s22, 1
      %p82 = por %p80, %p81
      %p83 = scmp.ne.s32.totalorder %s74, %s75
      %p84 = scmp.eq.s32.totalorder %s22, 0
      %p85 = por %p83, %p84
      %p86 = scmp.ne.s32.totalorder %s74, %s75
      %p87 = scmp.eq.s32.totalorder %s23, 1
      %p88 = por %p86, %p87
      %p90 = scmp.ne.s32.totalorder %s75, %s89
      %p91 = scmp.eq.s32.totalorder %s23, 0
      %p92 = por %p90, %p91
      %s94 = sadd.s32 %s93, 1
      %p97 = scmp.eq.s32.totalorder %s17, 1
      %p98 = scmp.ne.s32.totalorder %s93, %s95
      %p99 = scmp.eq.s32.totalorder %s17, 0
      %p100 = por %p98, %p99
      %p101 = scmp.ne.s32.totalorder %s93, %s95
      %p102 = scmp.eq.s32.totalorder %s22, 1
      %p103 = por %p101, %p102
      %p104 = scmp.ne.s32.totalorder %s95, %s96
      %p105 = scmp.eq.s32.totalorder %s22, 0
      %p106 = por %p104, %p105
      %p107 = scmp.ne.s32.totalorder %s95, %s96
      %p108 = scmp.eq.s32.totalorder %s23, 1
      %p109 = por %p107, %p108
      %p111 = scmp.ne.s32.totalorder %s96, %s110
      %p112 = scmp.eq.s32.totalorder %s23, 0
      %p113 = por %p111, %p112
      %s115 = sadd.s32 %s114, 1
      %p118 = scmp.eq.s32.totalorder %s17, 1
      %p119 = scmp.ne.s32.totalorder %s114, %s116
      %p120 = scmp.eq.s32.totalorder %s17, 0
      %p121 = por %p119, %p120
      %p122 = scmp.ne.s32.totalorder %s114, %s116
      %p123 = scmp.eq.s32.totalorder %s22, 1
      %p124 = por %p122, %p123
      %p125 = scmp.ne.s32.totalorder %s116, %s117
      %p126 = scmp.eq.s32.totalorder %s22, 0
      %p127 = por %p125, %p126
      %p128 = scmp.ne.s32.totalorder %s116, %s117
      %p129 = scmp.eq.s32.totalorder %s23, 1
      %p130 = por %p128, %p129
      %p132 = scmp.ne.s32.totalorder %s117, %s131
      %p133 = scmp.eq.s32.totalorder %s23, 0
      %p134 = por %p132, %p133
      %s136 = sadd.s32 %s135, 1
      %p139 = scmp.eq.s32.totalorder %s17, 1
      %p140 = scmp.ne.s32.totalorder %s135, %s137
      %p141 = scmp.eq.s32.totalorder %s17, 0
      %p142 = por %p140, %p141
      %p143 = scmp.ne.s32.totalorder %s135, %s137
      %p144 = scmp.eq.s32.totalorder %s22, 1
      %p145 = por %p143, %p144
      %p146 = scmp.ne.s32.totalorder %s137, %s138
      %p147 = scmp.eq.s32.totalorder %s22, 0
      %p148 = por %p146, %p147
      %p149 = scmp.ne.s32.totalorder %s137, %s138
      %p150 = scmp.eq.s32.totalorder %s23, 1
      %p151 = por %p149, %p150
      %p153 = scmp.ne.s32.totalorder %s138, %s152
      %p154 = scmp.eq.s32.totalorder %s23, 0
      %p155 = por %p153, %p154
      %s157 = sadd.s32 %s156, 1
      %p160 = scmp.eq.s32.totalorder %s17, 1
      %p161 = scmp.ne.s32.totalorder %s156, %s158
      %p162 = scmp.eq.s32.totalorder %s17, 0
      %p163 = por %p161, %p162
      %p164 = scmp.ne.s32.totalorder %s156, %s158
      %p165 = scmp.eq.s32.totalorder %s22, 1
      %p166 = por %p164, %p165
      %p167 = scmp.ne.s32.totalorder %s158, %s159
      %p168 = scmp.eq.s32.totalorder %s22, 0
      %p169 = por %p167, %p168
      %p170 = scmp.ne.s32.totalorder %s158, %s159
      %p171 = scmp.eq.s32.totalorder %s23, 1
      %p172 = por %p170, %p171
      %p174 = scmp.ne.s32.totalorder %s159, %s173
      %p175 = scmp.eq.s32.totalorder %s23, 0
      %p176 = por %p174, %p175
      %s177 = ssub.s32 %s17, %s24
      %p178 = scmp.eq.s32.totalorder %s177, 0
      %s180 = sadd.s32 %s179, 1
      %s181 = scalar_select %p178, %s179, %s180
      %p184 = pneg %p178
      %p185 = scmp.eq.s32.totalorder %s17, 1
      %p186 = por %p184, %p185
      %p187 = scmp.ne.s32.totalorder %s179, %s182
      %p188 = scmp.eq.s32.totalorder %s17, 0
      %p189 = por %p187, %p188
      %p190 = scmp.ne.s32.totalorder %s179, %s182
      %p191 = scmp.eq.s32.totalorder %s22, 1
      %p192 = por %p190, %p191
      %p193 = scmp.ne.s32.totalorder %s182, %s183
      %p194 = scmp.eq.s32.totalorder %s22, 0
      %p195 = por %p193, %p194
      %p196 = scmp.ne.s32.totalorder %s182, %s183
      %p197 = scmp.eq.s32.totalorder %s23, 1
      %p198 = por %p196, %p197
      %p200 = scmp.ne.s32.totalorder %s183, %s199
      %p201 = scmp.eq.s32.totalorder %s23, 0
      %p202 = por %p200, %p201
      %p203 = scmp.le.s32.totalorder 1, %s17
      %p204 = scmp.lt.s32.totalorder %s17, 3
      %p205 = pnand %p203, %p204
      %p206 = pneg %p205
      // Predicated region
      $region9: #{tpu_custom_call.1} parent=5 // pred_check
        _
      $region10: #{tpu_custom_call.1} parent=5 // pred_check_branch
        %208 = sbr.rel (%p205) target = $region12
      $region11: #{tpu_custom_call.1} parent=5 // pred_region
        %s209 = ssub.s32 %s17, 1
        // Predicated region
        $region13: #{tpu_custom_call.1} parent=11 // pred_check
          %p210 = pneg %p38
        $region14: #{tpu_custom_call.1} parent=11 // pred_check_branch
          %212 = sbr.rel (%p210) target = $region16
        $region15: #{tpu_custom_call.1} parent=11 // pred_region
          _
        $region16: #{tpu_custom_call.1} parent=11 // pred_fallthru
          _
        // Predicated region
        $region17: #{tpu_custom_call.1} parent=11 // pred_check
          %p213 = pneg %p85
        $region18: #{tpu_custom_call.1} parent=11 // pred_check_branch
          %215 = sbr.rel (%p213) target = $region20
        $region19: #{tpu_custom_call.1} parent=11 // pred_region
          _
        $region20: #{tpu_custom_call.1} parent=11 // pred_fallthru
          _
        // Predicated region
        $region21: #{tpu_custom_call.1} parent=11 // pred_check
          %p216 = pneg %p106
        $region22: #{tpu_custom_call.1} parent=11 // pred_check_branch
          %218 = sbr.rel (%p216) target = $region24
        $region23: #{tpu_custom_call.1} parent=11 // pred_region
          _
        $region24: #{tpu_custom_call.1} parent=11 // pred_fallthru
          _
        // Predicated region
        $region25: #{tpu_custom_call.1} parent=11 // pred_check
          %p219 = pneg %p127
        $region26: #{tpu_custom_call.1} parent=11 // pred_check_branch
          %221 = sbr.rel (%p219) target = $region28
        $region27: #{tpu_custom_call.1} parent=11 // pred_region
          _
        $region28: #{tpu_custom_call.1} parent=11 // pred_fallthru
          _
        // Predicated region
        $region29: #{tpu_custom_call.1} parent=11 // pred_check
          %p222 = pneg %p148
        $region30: #{tpu_custom_call.1} parent=11 // pred_check_branch
          %224 = sbr.rel (%p222) target = $region32
        $region31: #{tpu_custom_call.1} parent=11 // pred_region
          _
        $region32: #{tpu_custom_call.1} parent=11 // pred_fallthru
          _
        // Predicated region
        $region33: #{tpu_custom_call.1} parent=11 // pred_check
          %p225 = pneg %p169
        $region34: #{tpu_custom_call.1} parent=11 // pred_check_branch
          %227 = sbr.rel (%p225) target = $region36
        $region35: #{tpu_custom_call.1} parent=11 // pred_region
          _
        $region36: #{tpu_custom_call.1} parent=11 // pred_fallthru
          _
      $region12: #{tpu_custom_call.1} parent=5 // pred_fallthru
        _
      %p228 = scmp.lt.s32.totalorder %s17, 2
      // Predicated region
      $region37: #{tpu_custom_call.1} parent=5 // pred_check
        %p229 = pneg %p228
      $region38: #{tpu_custom_call.1} parent=5 // pred_check_branch
        %231 = sbr.rel (%p229) target = $region40
      $region39: #{tpu_custom_call.1} parent=5 // pred_region
        // Predicated region
        $region41: #{tpu_custom_call.1} parent=39 // pred_check
          %p232 = pneg %p58
        $region42: #{tpu_custom_call.1} parent=39 // pred_check_branch
          %234 = sbr.rel (%p232) target = $region44
        $region43: #{tpu_custom_call.1} parent=39 // pred_region
          %p235 = scmp.lt.s32.totalorder %s17, 1
          %s236 = scalar_select %p235, %s17, 1
          %s237 = smul.addr %s236, 2
          %s238 = smul.addr %s237, 4
          %s239 = scalar_lea.vmem %s1, %s238
        $region44: #{tpu_custom_call.1} parent=39 // pred_fallthru
          _
      $region40: #{tpu_custom_call.1} parent=5 // pred_fallthru
        _
      %p240 = scmp.le.s32.totalorder 1, %s17
      %p241 = scmp.lt.s32.totalorder %s17, 3
      %p242 = pnand %p240, %p241
      %p243 = pneg %p242
      // Predicated region
      $region45: #{tpu_custom_call.1} parent=5 // pred_check
        _
      $region46: #{tpu_custom_call.1} parent=5 // pred_check_branch
        %245 = sbr.rel (%p242) target = $region48
      $region47: #{tpu_custom_call.1} parent=5 // pred_region
        %s246 = ssub.s32 %s17, 1
        %p247 = pneg %p38
        %p248 = pneg %p35
        %p249 = scmp.lt.s32.totalorder %s22, 1
        %s250 = scalar_select %p249, %s22, 1
        %s251 = smul.addr %s250, 2
        %s252 = smul.addr %s251, 4
        %s253 = scalar_lea.vmem %s1, %s252
        %p254 = pneg %p64
        %p255 = pneg %p61
        %p256 = pneg %p85
        %p257 = pneg %p82
        %p258 = pneg %p106
        %p259 = pneg %p103
        %p260 = pneg %p127
        %p261 = pneg %p124
        %p262 = pneg %p148
        %p263 = pneg %p145
        %p264 = pneg %p169
        %p265 = pneg %p166
        %p266 = pneg %p195
        %p267 = pneg %p192
        %s268 = sand.u32 %s182, 1
        %s269 = scalar_lea.sflag [#allocation4], %s268
        %s270 = sand.u32 %s182, 1
        %s271 = smul.addr %s270, 8
        %s272 = scalar_lea.vmem [#allocation3], %s271
        %p273 = scmp.lt.s32.totalorder %s22, 1
        %s274 = scalar_select %p273, %s22, 1
        %s275 = smul.addr %s274, 2
        %s276 = smul.addr %s275, 4
        %s277 = scalar_lea.vmem %s1, %s276
        %v278 = vld [vmem:[%s277] sm:$0xff]
        %v280 = vcombine.high %v278, %v278
        %vm282 = vcmask 1043456
        %v283 = vsel %vm282, %v278, 0.0
        %v284 = vsel %vm282, %v280, 0.0
        %v285 = vadd.f32 %v283, %v284
        %286 = vadd.xlane.f32.xlu0 %v285
        %v287 = vpop.xlane.xlu0 %286
        %v288 = vmul.f32 %v287, 0.00390625
        %v289 = vld [vmem:[%s2] sm:$0xf]
        %v290 = vld [vmem:[%s3] sm:$0x1]
        %v291 = vld [vmem:[%s4] sm:$0xf]
        %v292 = vld [vmem:[%s5] sm:$0xf]
        %v293 = vmul.f32 %v289, %v288
        %vm294 = vcmask 11264
        %v295 = vsel %vm294, %v293, 0.0
        %v296 = vrot.slane %v295, 4
        %v297 = vadd.f32 %v295, %v296
        %v298 = vrot.slane %v297, 2
        %v299 = vadd.f32 %v297, %v298
        %v300 = vrot.slane %v299, 1
        %v301 = vadd.f32 %v299, %v300
        %v302 = vadd.f32 %v301, %v290
        %v303 = vmax.f32 %v302, 0.0
        %v304 = vlaneseq
        %v305 = vshrl.u32 %v304, 7
        %v306 = vsub.s32 0, %v305
        %v307 = vrot.slane %v303, %v306
        %v308 = vmul.f32 %v291, %v307
        %v309 = vsel %vm294, %v308, 0.0
        %310 = vadd.xlane.f32.xlu0 %v309
        %v311 = vpop.xlane.xlu0 %310
        %v312 = vadd.f32 %v311, %v292
        %v313 = vxor.u32 %v312, 2147483648
        %v314 = vmul.f32 %v313, 1.442695
        %v315 = vpow.pop %v314
        %v316 = vadd.f32 %v315, 1.0
        %v317 = vrcp.pop %v316
        %v318 = vmul.f32 1.0, %v317
        %v319 = vld [vmem:[%s6] sm:$0xf]
        %321 = vset.pattern.permute.xlu0 0
        %322 = vperm.xlu0 %321, %v319
        %v323 = vpop.permute.xlu0 %322
        %v325 = vunpack.c.l.s4 839922192
        %v326 = vunpack.c.0.s8 %v325
        %v327 = vlaneseq
        %v328 = vshrl.u32 %v327, 7
        %v329 = vsub.s32 %v326, %v328
        %v330 = vrot.slane %v323, %v329
        %v332 = vmul.f32 %v278, %v330
        %v334 = vcombine.high %v332, %v332
        %v336 = vsel %vm282, %v332, 0.0
        %v337 = vrot.slane %v336, 4
        %v338 = vadd.f32 %v336, %v337
        %v339 = vrot.slane %v338, 2
        %v340 = vadd.f32 %v338, %v339
        %v341 = vrot.slane %v340, 1
        %v342 = vadd.f32 %v340, %v341
        %v343 = vsel %vm282, %v334, 0.0
        %v344 = vrot.slane %v343, 4
        %v345 = vadd.f32 %v343, %v344
        %v346 = vrot.slane %v345, 2
        %v347 = vadd.f32 %v345, %v346
        %v348 = vrot.slane %v347, 1
        %v349 = vadd.f32 %v347, %v348
        %s350 = sld [smem:[#allocation2]]
        %v351 = vstv %s350
        %v352 = vadd.f32 %v342, %v351
        %v353 = vadd.f32 %v349, %v351
        %v354 = vxor.u32 %v352, 2147483648
        %v355 = vxor.u32 %v353, 2147483648
        %v356 = vmul.f32 %v354, 1.442695
        %v357 = vpow.pop %v356
        %v358 = vmul.f32 %v355, 1.442695
        %v359 = vpow.pop %v358
        %v360 = vadd.f32 %v357, 1.0
        %v361 = vadd.f32 %v359, 1.0
        %v362 = vrcp.pop %v360
        %v363 = vmul.f32 1.0, %v362
        %v364 = vrcp.pop %v361
        %v365 = vmul.f32 1.0, %v364
        %367 = vset.pattern.permute.xlu0 0
        %368 = vperm.xlu0 %367, %v318
        %v369 = vpop.permute.xlu0 %368
        %v371 = vunpack.c.l.s4 839922192
        %v372 = vunpack.c.0.s8 %v371
        %v373 = vlaneseq
        %v374 = vshrl.u32 %v373, 7
        %v375 = vsub.s32 %v372, %v374
        %v376 = vrot.slane %v369, %v375
        %v378 = vmul.f32 %v278, %v376
        %v381 = vcombine.low %v363, %v365
        %v383 = vmul.f32 %v278, %v381
        %v384 = vmax.f32 %v378, %v383
        %385 = vst [vmem:[%s272] sm:$0xff] %v384
        %s386 = sand.u32 %s182, 1
        %s387 = scalar_lea.sflag [#allocation4], %s386
        %s388 = sand.u32 %s182, 1
        %s389 = smul.addr %s388, 8
        %s390 = scalar_lea.vmem [#allocation3], %s389
        // Predicated region
        $region49: #{tpu_custom_call.1} parent=47 // pred_check
          %p391 = pneg %p192
        $region50: #{tpu_custom_call.1} parent=47 // pred_check_branch
          %393 = sbr.rel (%p391) target = $region52
        $region51: #{tpu_custom_call.1} parent=47 // pred_region
          %s395 = ssub.s32 128, 128
          %396 = vsyncadd %s387, %s395
          %s397 = smul.addr %s22, 2
          %s398 = smul.addr %s397, 64
          %s399 = scalar_lea.hbm %s7, %s398
          %s401 = sshll.u32 %s390, 4
          %s402 = int_to_ptr.vmem [resolvable:$true] %s401
          %404 = dma.vmem_to_hbm [thread:$0]  %s402, 128, %s399, %s387
        $region52: #{tpu_custom_call.1} parent=47 // pred_fallthru
          _
      $region48: #{tpu_custom_call.1} parent=5 // pred_fallthru
        _
      %p405 = scmp.le.s32.totalorder 2, %s17
      // Predicated region
      $region53: #{tpu_custom_call.1} parent=5 // pred_check
        %p406 = pneg %p405
      $region54: #{tpu_custom_call.1} parent=5 // pred_check_branch
        %408 = sbr.rel (%p406) target = $region56
      $region55: #{tpu_custom_call.1} parent=5 // pred_region
        %s409 = ssub.s32 %s17, 2
        // Predicated region
        $region57: #{tpu_custom_call.1} parent=55 // pred_check
          %p410 = pneg %p198
        $region58: #{tpu_custom_call.1} parent=55 // pred_check_branch
          %412 = sbr.rel (%p410) target = $region60
        $region59: #{tpu_custom_call.1} parent=55 // pred_region
          %s413 = sand.u32 %s183, 1
          %s414 = scalar_lea.sflag [#allocation4], %s413
          %s415 = sand.u32 %s183, 1
          %s416 = smul.addr %s415, 8
          %s417 = scalar_lea.vmem [#allocation3], %s416
          %418 = dma.done %s414, 128
        $region60: #{tpu_custom_call.1} parent=55 // pred_fallthru
          _
      $region56: #{tpu_custom_call.1} parent=5 // pred_fallthru
        _
    $region6: #{tpu_custom_call.1} parent=1 // loop_footer
      %s21 = sadd.s32 1, %s17
    $region7: #{tpu_custom_call.1} parent=1 // loop_footer_branch
      %16 = sbr.rel target = $region3
    $region8: #{tpu_custom_call.1} parent=1 // loop_exit
      _
    %419 = vsyncpa [#allocation4], 1
    %s420 = scalar_lea.sflag [#allocation4], 1
    %421 = vsyncpa %s420, 1

</llo_original>
